<compile_context>
chip_gen: v7x
topology: tpu7x:2x2x1
jax: 0.10.0
libtpu: 0.0.40
codegen_flags: <defaults>
</compile_context>

<pallas_src>
import jax
import jax.numpy as jnp
from jax.experimental import pallas as pl
from jax.experimental.pallas import tpu as pltpu


def xor_kernel(p_ref, x_ref, o_ref):
    # p_ref: SMEM (9,) f32 = [W1[0,0], W1[0,1], W1[1,0], W1[1,1], b1[0], b1[1],
    #                         W2[0,0], W2[0,1], b2[0]]
    # x_ref: VMEM (2, s_tile, 128) f32 (feature-major, batch on sublanes+lanes)
    # o_ref: VMEM (s_tile, 128) f32
    x0 = x_ref[0]                                        # (s_tile, 128)
    x1 = x_ref[1]                                        # (s_tile, 128)

    # fc1 + tanh : VPU broadcast FMAs feeding the EUP (no MXU for K=2).
    h0 = jnp.tanh(p_ref[0] * x0 + p_ref[1] * x1 + p_ref[4])
    h1 = jnp.tanh(p_ref[2] * x0 + p_ref[3] * x1 + p_ref[5])

    # fc2 + sigmoid : sigmoid(y) == 0.5 * (1 + tanh(y/2)) -> single EUP op,
    # no exp + full-precision divide, and robust for extreme logits.
    y = p_ref[6] * h0 + p_ref[7] * h1 + p_ref[8]         # (s_tile, 128)
    o_ref[...] = 0.5 * (1.0 + jnp.tanh(0.5 * y))


def xor_forward(x, w1, b1, w2, b2, *, s_tile=2048):
    """x: (B, 2); w1: (2, 2) [out,in]; b1: (2,); w2: (1, 2) [out,in]; b2: (1,).

    Returns (B, 1) float32, matching XORNetwork.forward.
    s_tile rows x 128 lanes per grid step (default ~3 MiB of blocks, ~6 MiB
    double-buffered: safe on v5e/v6e/v7x scoped-VMEM defaults).
    """
    B = x.shape[0]
    LANES = 128

    # Pack all 9 parameters into one SMEM-resident scalar block.
    params = jnp.concatenate(
        [w1.reshape(-1), b1.reshape(-1), w2.reshape(-1), b2.reshape(-1)]
    ).astype(jnp.float32)                                # (9,)

    # Batch layout: rows of 128 lanes, s_tile rows per block (multiple of 8).
    s_rows = pl.cdiv(B, LANES)                           # rows needed
    s_tile_eff = min(s_tile, ((s_rows + 7) // 8) * 8)    # clamp for small B
    n_tiles = pl.cdiv(s_rows, s_tile_eff)
    s_pad = n_tiles * s_tile_eff
    b_pad = s_pad * LANES

    # Feature-major; pad only the ragged tail (single cheap pass when needed).
    # NOTE: if the producer can hand us x already feature-major / padded, this
    # transpose+pad disappears entirely.
    x_t = x.astype(jnp.float32).T                        # (2, B)
    if b_pad != B:
        x_t = jnp.pad(x_t, ((0, 0), (0, b_pad - B)))
    x_t = x_t.reshape(2, s_pad, LANES)                   # (2, S_pad, 128)

    out = pl.pallas_call(
        xor_kernel,
        out_shape=jax.ShapeDtypeStruct((s_pad, LANES), jnp.float32),
        grid=(n_tiles,),
        in_specs=[
            pl.BlockSpec(memory_space=pltpu.MemorySpace.SMEM),          # packed params
            pl.BlockSpec((2, s_tile_eff, LANES), lambda i: (0, i, 0)),  # x slab
        ],
        out_specs=pl.BlockSpec((s_tile_eff, LANES), lambda i: (i, 0)),  # lane-dense out
        compiler_params=pltpu.CompilerParams(
            # Megacore sharding on v7x; measured no-op on single-TC v5e/v6e.
            dimension_semantics=("parallel",),
        ),
    )(params, x_t)

    return out.reshape(-1)[:B].reshape(B, 1)


def init_params(key, mean=0.0, std=1.0, constant_bias=0.5):
    """Mimics XORNetwork.setWeights: clamped normal weights, constant biases."""
    k1, k2 = jax.random.split(key)
    w1 = jnp.clip(mean + std * jax.random.normal(k1, (2, 2), jnp.float32),
                  -2.0 * std, 2.0 * std)             # fc1.weight (out=2, in=2)
    w2 = jnp.clip(mean + std * jax.random.normal(k2, (1, 2), jnp.float32),
                  -2.0 * std, 2.0 * std)             # fc2.weight (out=1, in=2)
    b1 = jnp.full((2,), constant_bias, jnp.float32)  # fc1.bias
    b2 = jnp.full((1,), constant_bias, jnp.float32)  # fc2.bias
    return w1, b1, w2, b2


def reference_forward(x, w1, b1, w2, b2):
    h = jnp.tanh(x @ w1.T + b1)
    return jax.nn.sigmoid(h @ w2.T + b2)


if __name__ == "__main__":
    key = jax.random.PRNGKey(0)
    kx, kp = jax.random.split(key)
    w1, b1, w2, b2 = init_params(kp)

    # (B, s_tile) cases: single small tile, ragged batch, and a multi-tile grid.
    for B, s_tile in ((8, 2048), (1000, 2048), (3000, 8)):
        x = jax.random.uniform(jax.random.fold_in(kx, B), (B, 2), jnp.float32)
        out = jax.block_until_ready(xor_forward(x, w1, b1, w2, b2, s_tile=s_tile))
        ref = reference_forward(x, w1, b1, w2, b2)
        assert out.shape == (B, 1)
        assert jnp.allclose(out, ref, atol=1e-5, rtol=1e-5)

    print("KERNEL_OK")
</pallas_src>

<mosaic_0001>
module attributes {stable_mosaic.version = 11 : i64} {
  func.func @xor_kernel(%arg0: i32, %arg1: memref<9xf32, #tpu.memory_space<smem>>, %arg2: memref<2x8x128xf32, #tpu.memory_space<vmem>>, %arg3: memref<8x128xf32, #tpu.memory_space<vmem>>) attributes {dimension_semantics = [#tpu.dimension_semantics<parallel>], iteration_bounds = array<i64: 1>, scalar_prefetch = 0 : i64, scratch_operands = 0 : i64, tpu.core_type = #tpu.core_type<tc>, window_params = [{transform_indices = @transform_0, window_bounds = array<i64: 9>}, {transform_indices = @transform_1, window_bounds = array<i64: 2, 8, 128>}, {transform_indices = @transform_2, window_bounds = array<i64: 8, 128>}]} {
    %c0 = arith.constant 0 : index
    %c0_0 = arith.constant 0 : index
    %c0_1 = arith.constant 0 : index
    %0 = vector.load %arg2[%c0, %c0_0, %c0_1] : memref<2x8x128xf32, #tpu.memory_space<vmem>>, vector<1x8x128xf32>
    %1 = vector.shape_cast %0 : vector<1x8x128xf32> to vector<8x128xf32>
    %c1 = arith.constant 1 : index
    %c0_2 = arith.constant 0 : index
    %c0_3 = arith.constant 0 : index
    %2 = vector.load %arg2[%c1, %c0_2, %c0_3] : memref<2x8x128xf32, #tpu.memory_space<vmem>>, vector<1x8x128xf32>
    %3 = vector.shape_cast %2 : vector<1x8x128xf32> to vector<8x128xf32>
    %c0_4 = arith.constant 0 : index
    %4 = memref.load %arg1[%c0_4] : memref<9xf32, #tpu.memory_space<smem>>
    %5 = vector.broadcast %4 : f32 to vector<8x128xf32>
    %6 = arith.mulf %5, %1 : vector<8x128xf32>
    %c1_5 = arith.constant 1 : index
    %7 = memref.load %arg1[%c1_5] : memref<9xf32, #tpu.memory_space<smem>>
    %8 = vector.broadcast %7 : f32 to vector<8x128xf32>
    %9 = arith.mulf %8, %3 : vector<8x128xf32>
    %10 = arith.addf %6, %9 : vector<8x128xf32>
    %c4 = arith.constant 4 : index
    %11 = memref.load %arg1[%c4] : memref<9xf32, #tpu.memory_space<smem>>
    %12 = vector.broadcast %11 : f32 to vector<8x128xf32>
    %13 = arith.addf %10, %12 : vector<8x128xf32>
    %14 = math.tanh %13 : vector<8x128xf32>
    %c2 = arith.constant 2 : index
    %15 = memref.load %arg1[%c2] : memref<9xf32, #tpu.memory_space<smem>>
    %16 = vector.broadcast %15 : f32 to vector<8x128xf32>
    %17 = arith.mulf %16, %1 : vector<8x128xf32>
    %c3 = arith.constant 3 : index
    %18 = memref.load %arg1[%c3] : memref<9xf32, #tpu.memory_space<smem>>
    %19 = vector.broadcast %18 : f32 to vector<8x128xf32>
    %20 = arith.mulf %19, %3 : vector<8x128xf32>
    %21 = arith.addf %17, %20 : vector<8x128xf32>
    %c5 = arith.constant 5 : index
    %22 = memref.load %arg1[%c5] : memref<9xf32, #tpu.memory_space<smem>>
    %23 = vector.broadcast %22 : f32 to vector<8x128xf32>
    %24 = arith.addf %21, %23 : vector<8x128xf32>
    %25 = math.tanh %24 : vector<8x128xf32>
    %c6 = arith.constant 6 : index
    %26 = memref.load %arg1[%c6] : memref<9xf32, #tpu.memory_space<smem>>
    %27 = vector.broadcast %26 : f32 to vector<8x128xf32>
    %28 = arith.mulf %27, %14 : vector<8x128xf32>
    %c7 = arith.constant 7 : index
    %29 = memref.load %arg1[%c7] : memref<9xf32, #tpu.memory_space<smem>>
    %30 = vector.broadcast %29 : f32 to vector<8x128xf32>
    %31 = arith.mulf %30, %25 : vector<8x128xf32>
    %32 = arith.addf %28, %31 : vector<8x128xf32>
    %c8 = arith.constant 8 : index
    %33 = memref.load %arg1[%c8] : memref<9xf32, #tpu.memory_space<smem>>
    %34 = vector.broadcast %33 : f32 to vector<8x128xf32>
    %35 = arith.addf %32, %34 : vector<8x128xf32>
    %cst = arith.constant 5.000000e-01 : f32
    %36 = vector.broadcast %cst : f32 to vector<8x128xf32>
    %37 = arith.mulf %36, %35 : vector<8x128xf32>
    %38 = math.tanh %37 : vector<8x128xf32>
    %cst_6 = arith.constant 1.000000e+00 : f32
    %39 = vector.broadcast %cst_6 : f32 to vector<8x128xf32>
    %40 = arith.addf %39, %38 : vector<8x128xf32>
    %cst_7 = arith.constant 5.000000e-01 : f32
    %41 = vector.broadcast %cst_7 : f32 to vector<8x128xf32>
    %42 = arith.mulf %41, %40 : vector<8x128xf32>
    %c0_8 = arith.constant 0 : index
    %c0_9 = arith.constant 0 : index
    %43 = vector.load %arg3[%c0_8, %c0_9] : memref<8x128xf32, #tpu.memory_space<vmem>>, vector<8x128xf32>
    tpu.vector_store %arg3[%c0_8, %c0_9], %42 {strides = array<i32>} : memref<8x128xf32, #tpu.memory_space<vmem>>, vector<8x128xf32>,
    return
  }
  func.func @transform_0(%arg0: i32) -> i32 {
    %c0_i32 = arith.constant 0 : i32
    %c0_i32_0 = arith.constant 0 : i32
    return %c0_i32 : i32
  }
  func.func @transform_1(%arg0: i32) -> (i32, i32, i32) {
    %c0_i32 = arith.constant 0 : i32
    %c0_i32_0 = arith.constant 0 : i32
    %c0_i32_1 = arith.constant 0 : i32
    return %c0_i32, %arg0, %c0_i32_0 : i32, i32, i32
  }
  func.func @transform_2(%arg0: i32) -> (i32, i32) {
    %c0_i32 = arith.constant 0 : i32
    %c0_i32_0 = arith.constant 0 : i32
    return %arg0, %c0_i32 : i32, i32
  }
}

</mosaic_0001>

<llo_original>
// kernel: tpu_custom_call.1
$region0: #{tpu_custom_call.1}
  #allocation0 [shape = 'u32[]', space=smem, size = 0x4, offset = 0x4, fixed_abs, tag = 'smem constant byte address 0x4 - core index']
  #allocation1 [shape = 'u32[144,128]{1,0:T(1,128)}', space=vmem, size = 0x12000, scoped, tag = 'internal scratch']
  %s0 = inlined_call_operand.hbm [shape: f32[9], index: 0, kind: input, shape index: {}]
  %s1 = inlined_call_operand.hbm [shape: f32[2,8,128], index: 1, kind: input, shape index: {}]
  %s2 = inlined_call_operand.hbm [shape: f32[8,128], index: 2, kind: output, shape index: {}]
  %s3 = sld [smem:[#allocation0]]
  $region26: #{tpu_custom_call.1} parent=0
    _
  %s5 = ssub.s32 1, %s3
  %s6 = scalar_select 0, %s5, %s3
  $region1: #{tpu_custom_call.1} parent=0
    #allocation2 [shape = 'u8[512]{0}', space=smem, size = 0x200, scoped, tag = 'input window, operand 0, single buffered']
    #allocation3 [shape = 's32[1]{0}', space=sflag, size = 0x4, scoped, tag = 'scoped memory for tpu_custom_call.1']
    #allocation4 [shape = 's32[1]{0}', space=sflag, size = 0x4, scoped, tag = 'scoped memory for tpu_custom_call.1']
    #allocation5 [shape = 's32[1]{0}', space=sflag, size = 0x4, scoped, tag = 'scoped memory for tpu_custom_call.1']
    #allocation6 [shape = 'u8[8192]{0}', space=vmem, size = 0x2000, scoped, tag = 'input window, operand 1, single buffered']
    #allocation7 [shape = 'u8[4096]{0}', space=vmem, size = 0x1000, scoped, tag = 'output window, operand 0, single buffered']
    %7 = vsyncpa [#allocation5], 0
    %8 = vsyncpa [#allocation3], 0
    %9 = vsyncpa [#allocation4], 0
    // Predicated region
    $region2: #{tpu_custom_call.1} parent=1 // pred_check
      _
    $region3: #{tpu_custom_call.1} parent=1 // pred_check_branch
      %11 = sbr.rel (0) target = $region5
    $region4: #{tpu_custom_call.1} parent=1 // pred_region
      %s13 = ssub.s32 16, 16
      %14 = vsyncadd [#allocation5], %s13
      %17 = dma.hbm_to_smem %s0, 16, [#allocation2], [#allocation5]
    $region5: #{tpu_custom_call.1} parent=1 // pred_fallthru
      _
    // Predicated region
    $region6: #{tpu_custom_call.1} parent=1 // pred_check
      _
    $region7: #{tpu_custom_call.1} parent=1 // pred_check_branch
      %19 = sbr.rel (0) target = $region9
    $region8: #{tpu_custom_call.1} parent=1 // pred_region
      %s21 = ssub.s32 256, 256
      %22 = vsyncadd [#allocation3], %s21
      %s23 = sshll.u32 [#allocation6], 4
      %s24 = int_to_ptr.vmem [resolvable:$true] %s23
      %29 = dma.hbm_to_vmem [thread:$0]  %s1, 256, %s24, [#allocation3], 128, 128, 8
    $region9: #{tpu_custom_call.1} parent=1 // pred_fallthru
      _
    // Predicated region
    $region10: #{tpu_custom_call.1} parent=1 // pred_check
      _
    $region11: #{tpu_custom_call.1} parent=1 // pred_check_branch
      %31 = sbr.rel (0) target = $region13
    $region12: #{tpu_custom_call.1} parent=1 // pred_region
      %32 = dma.done [#allocation5], 16
    $region13: #{tpu_custom_call.1} parent=1 // pred_fallthru
      _
    // Predicated region
    $region14: #{tpu_custom_call.1} parent=1 // pred_check
      _
    $region15: #{tpu_custom_call.1} parent=1 // pred_check_branch
      %34 = sbr.rel (0) target = $region17
    $region16: #{tpu_custom_call.1} parent=1 // pred_region
      %35 = dma.done [#allocation3], 256
    $region17: #{tpu_custom_call.1} parent=1 // pred_fallthru
      _
    %36 = sfence
    %v37 = vld [vmem:[#allocation6] sm:$0xff]
    %s38 = scalar_lea.vmem [#allocation6], 8
    %v39 = vld [vmem:[%s38] sm:$0xff]
    %s40 = sld [smem:[#allocation2]]
    %v41 = vstv %s40
    %v42 = vmul.f32 %v41, %v37
    %s43 = sld [smem:[#allocation2 + $0x1]]
    %v44 = vstv %s43
    %v45 = vmul.f32 %v44, %v39
    %v46 = vadd.f32 %v42, %v45
    %s47 = sld [smem:[#allocation2 + $0x4]]
    %v48 = vstv %s47
    %v49 = vadd.f32 %v46, %v48
    %v50 = vtanh.pop %v49
    %s51 = sld [smem:[#allocation2 + $0x2]]
    %v52 = vstv %s51
    %v53 = vmul.f32 %v52, %v37
    %s54 = sld [smem:[#allocation2 + $0x3]]
    %v55 = vstv %s54
    %v56 = vmul.f32 %v55, %v39
    %v57 = vadd.f32 %v53, %v56
    %s58 = sld [smem:[#allocation2 + $0x5]]
    %v59 = vstv %s58
    %v60 = vadd.f32 %v57, %v59
    %v61 = vtanh.pop %v60
    %s62 = sld [smem:[#allocation2 + $0x6]]
    %v63 = vstv %s62
    %v64 = vmul.f32 %v63, %v50
    %s65 = sld [smem:[#allocation2 + $0x7]]
    %v66 = vstv %s65
    %v67 = vmul.f32 %v66, %v61
    %v68 = vadd.f32 %v64, %v67
    %s69 = sld [smem:[#allocation2 + $0x8]]
    %v70 = vstv %s69
    %v71 = vadd.f32 %v68, %v70
    %v72 = vmul.f32 %v71, 0.5
    %v73 = vtanh.pop %v72
    %v74 = vadd.f32 %v73, 1.0
    %v75 = vmul.f32 %v74, 0.5
    %76 = vst [vmem:[#allocation7] sm:$0xff] %v75
    // Predicated region
    $region18: #{tpu_custom_call.1} parent=1 // pred_check
      _
    $region19: #{tpu_custom_call.1} parent=1 // pred_check_branch
      %78 = sbr.rel (0) target = $region21
    $region20: #{tpu_custom_call.1} parent=1 // pred_region
      %s80 = ssub.s32 128, 128
      %81 = vsyncadd [#allocation4], %s80
      %s83 = sshll.u32 [#allocation7], 4
      %s84 = int_to_ptr.vmem [resolvable:$true] %s83
      %86 = dma.vmem_to_hbm [thread:$0]  %s84, 128, %s2, [#allocation4]
    $region21: #{tpu_custom_call.1} parent=1 // pred_fallthru
      _
    // Predicated region
    $region22: #{tpu_custom_call.1} parent=1 // pred_check
      _
    $region23: #{tpu_custom_call.1} parent=1 // pred_check_branch
      %88 = sbr.rel (0) target = $region25
    $region24: #{tpu_custom_call.1} parent=1 // pred_region
      %89 = dma.done [#allocation4], 128
    $region25: #{tpu_custom_call.1} parent=1 // pred_fallthru
      _
    %90 = vsyncpa [#allocation3], 1
    %91 = vsyncpa [#allocation4], 1
    %92 = vsyncpa [#allocation5], 1

</llo_original>
